<compile_context>
chip_gen: v5e
topology: v5e:2x2
jax: 0.10.0
libtpu: 0.0.40
codegen_flags: <defaults>
</compile_context>

<pallas_src>
from typing import NamedTuple

import jax
import jax.numpy as jnp
from jax.experimental import pallas as pl
from jax.experimental.pallas import tpu as pltpu


def _round_up(n, m):
    return ((n + m - 1) // m) * m


def _cdiv(a, b):
    return -(-a // b)


def _pad2d(a, rows, cols):
    r, c = a.shape
    if r == rows and c == cols:
        return a
    return jnp.pad(a, ((0, rows - r), (0, cols - c)))


def _tpu_hints():
    """(physical VMEM bytes, looks-like-v7x) with safe fallbacks."""
    vmem = 128 * 1024 * 1024
    is_v7 = False
    try:
        info = pltpu.get_tpu_info()
        v = getattr(info, "vmem_capacity_bytes", None)
        if v:
            vmem = int(v)
    except Exception:
        pass
    try:
        kind = jax.devices()[0].device_kind.lower()
        if "v7" in kind:
            is_v7 = True
    except Exception:
        pass
    return vmem, (is_v7 or vmem <= 64 * 1024 * 1024)


class TFAEParams(NamedTuple):
    w_enc: jax.Array  # [Gp, Kp]  masked encoder weight, transposed + cast + padded
    w_int: jax.Array  # [Kp, Ip]
    w_dec: jax.Array  # [Ip, Dp]
    w_out: jax.Array  # [Dp, Gop]
    g_in: int
    g_out: int
    tile_g: int


def prepare_tf_autoencoder_params(w_enc, w_int, w_dec, w_out, *,
                                  compute_dtype=jnp.bfloat16, max_tile_g=None):
    """One-time weight prep (hoisted out of the forward hot path).

    Weights are given in PyTorch Linear layout [out_features, in_features];
    they are transposed to [in, out], cast to the compute dtype and zero-padded
    to lane multiples (exact under ReLU: relu(0)=0, zero rows/cols contribute
    nothing). Also picks the output-gene tile size.
    """
    K, G = w_enc.shape
    I = w_int.shape[0]
    D = w_dec.shape[0]
    G_out = w_out.shape[0]

    Gp, Kp, Ip, Dp = (_round_up(d, 128) for d in (G, K, I, D))

    if max_tile_g is None:
        _, is_v7 = _tpu_hints()
        # Bound w_out residency and the f32 final-layer temp on v7x's 64 MiB VMEM.
        max_tile_g = 2048 if is_v7 else 8192
    Gop0 = _round_up(G_out, 128)
    ng = max(1, _cdiv(Gop0, max_tile_g))
    tile_g = _round_up(_cdiv(Gop0, ng), 128)
    Gop = ng * tile_g

    return TFAEParams(
        w_enc=_pad2d(jnp.asarray(w_enc).T.astype(compute_dtype), Gp, Kp),
        w_int=_pad2d(jnp.asarray(w_int).T.astype(compute_dtype), Kp, Ip),
        w_dec=_pad2d(jnp.asarray(w_dec).T.astype(compute_dtype), Ip, Dp),
        w_out=_pad2d(jnp.asarray(w_out).T.astype(compute_dtype), Dp, Gop),
        g_in=G, g_out=G_out, tile_g=tile_g,
    )


def _ae_kernel(x_ref, w_enc_ref, w_int_ref, w_dec_ref, w_out_ref, o_ref, h3_ref):
    # Fused 4-layer matmul + ReLU chain. Dots accumulate in f32 on the MXU;
    # relu runs in f32 on the VPU, then casts back to bf16 for the next MXU pass.
    cdt = w_int_ref.dtype

    @pl.when(pl.program_id(1) == 0)
    def _():
        # Layers 1-3 run once per batch tile (j == 0); the result stays in VMEM
        # scratch and is reused by every output-gene tile j.
        h = jnp.dot(x_ref[...].astype(cdt), w_enc_ref[...],
                    preferred_element_type=jnp.float32)
        h = jnp.maximum(h, 0.0).astype(cdt)             # encoder + tfa_activation
        h = jnp.dot(h, w_int_ref[...], preferred_element_type=jnp.float32)
        h = jnp.maximum(h, 0.0).astype(cdt)             # intermediate layer + relu
        h = jnp.dot(h, w_dec_ref[...], preferred_element_type=jnp.float32)
        h3_ref[...] = jnp.maximum(h, 0.0).astype(cdt)   # decoder hidden layer + relu

    y = jnp.dot(h3_ref[...], w_out_ref[...], preferred_element_type=jnp.float32)
    o_ref[...] = jnp.maximum(y, 0.0).astype(o_ref.dtype)  # output_activation (relu)


def tf_multilayer_autoencoder_forward(x, params: TFAEParams, *,
                                      tile_b=None, out_dtype=None):
    """x:[B, G]. Returns [B, g_out] in out_dtype (default: compute dtype / bf16)."""
    B, G = x.shape
    assert G == params.g_in, "gene dimension mismatch"

    Gp, Kp = params.w_enc.shape
    Ip = params.w_int.shape[1]
    Dp = params.w_dec.shape[1]
    Gop = params.w_out.shape[1]
    tile_g = params.tile_g
    ng = Gop // tile_g
    cdt = params.w_enc.dtype
    if out_dtype is None:
        out_dtype = cdt  # bf16 output: halves the store stream + output VMEM slabs

    vmem_total, is_v7 = _tpu_hints()

    # Batch tile: multiple of 16 (bf16 sublane packing), balanced so padding waste
    # stays under one granule; capped at 128 on v7x (VMEM + dual-TC), raised to 512
    # when all widths are small (amortizes ~0.35 us/step grid overhead), else 256.
    if tile_b is None:
        small = max(Gp, Gop, Kp, Ip, Dp) <= 1024
        max_tile = 128 if is_v7 else (512 if small else 256)
        nb = max(1, _cdiv(B, max_tile))
        if is_v7 and B > 128:
            nb = max(nb, 2)          # keep both v7x TensorCores busy
        tile_b = _round_up(_cdiv(B, nb), 16)
    else:
        tile_b = _round_up(max(int(tile_b), 16), 16)   # enforce sublane-safe tiles
    Bp = _round_up(B, tile_b)
    nb = Bp // tile_b

    # x: feed straight through when no padding is needed (cast to bf16 in-kernel,
    # where the VPU has slack under the MXU); otherwise one fused cast+pad pass.
    if Bp == B and Gp == G:
        xp = x
    else:
        xp = _pad2d(x.astype(cdt), Bp, Gp)

    # Generation-aware scoped-VMEM limit: generous on v5e/v6e (128 MiB physical),
    # capped with headroom on v7x (64 MiB physical).
    vmem_limit = min(vmem_total - 8 * 1024 * 1024, 100 * 1024 * 1024)
    if is_v7:
        vmem_limit = min(vmem_limit, 56 * 1024 * 1024)
    vmem_limit = max(vmem_limit, 32 * 1024 * 1024)

    c_bytes = jnp.dtype(cdt).itemsize
    flops = 2 * Bp * (Gp * Kp + Kp * Ip + Ip * Dp + Dp * Gop)
    bytes_accessed = (
        xp.size * xp.dtype.itemsize
        + (params.w_enc.size + params.w_int.size
           + params.w_dec.size + params.w_out.size) * c_bytes
        + Bp * Gop * jnp.dtype(out_dtype).itemsize
    )

    # Output-layer weight: gene-tiled. Single-buffer it only when it is grid-invariant.
    if ng == 1:
        w_out_spec = pl.BlockSpec((Dp, tile_g), lambda i, j: (0, j),
                                  pipeline_mode=pl.Buffered(1))
    else:
        w_out_spec = pl.BlockSpec((Dp, tile_g), lambda i, j: (0, j))

    out = pl.pallas_call(
        _ae_kernel,
        out_shape=jax.ShapeDtypeStruct((Bp, Gop), out_dtype),
        grid_spec=pltpu.PrefetchScalarGridSpec(
            num_scalar_prefetch=0,
            grid=(nb, ng),
            in_specs=[
                # x tile: varies over the batch axis only (no re-DMA across j).
                pl.BlockSpec((tile_b, Gp), lambda i, j: (i, 0)),
                # Grid-invariant weights: single-buffered (DMA'd once, resident).
                pl.BlockSpec((Gp, Kp), lambda i, j: (0, 0), pipeline_mode=pl.Buffered(1)),
                pl.BlockSpec((Kp, Ip), lambda i, j: (0, 0), pipeline_mode=pl.Buffered(1)),
                pl.BlockSpec((Ip, Dp), lambda i, j: (0, 0), pipeline_mode=pl.Buffered(1)),
                w_out_spec,
            ],
            out_specs=pl.BlockSpec((tile_b, tile_g), lambda i, j: (i, j)),
            scratch_shapes=[pltpu.VMEM((tile_b, Dp), cdt)],   # h3 carried across j
        ),
        compiler_params=pltpu.CompilerParams(
            dimension_semantics=("parallel", "arbitrary"),
            vmem_limit_bytes=int(vmem_limit),
        ),
        cost_estimate=pl.CostEstimate(
            flops=flops, transcendentals=0, bytes_accessed=bytes_accessed),
    )(xp, params.w_enc, params.w_int, params.w_dec, params.w_out)

    return out[:B, :params.g_out]


def reference_forward(x, w_enc, w_int, w_dec, w_out, compute_dtype=jnp.bfloat16):
    # Pure-JAX reference mirroring the kernel's precision:
    # bf16 operands, f32 MXU accumulation, relu in f32. Weights in PyTorch [out, in] layout.
    def mm(a, b):
        return jnp.dot(a.astype(compute_dtype), b.T.astype(compute_dtype),
                       preferred_element_type=jnp.float32)

    h = jnp.maximum(mm(x, w_enc), 0.0)
    h = jnp.maximum(mm(h, w_int), 0.0)
    h = jnp.maximum(mm(h, w_dec), 0.0)
    return jnp.maximum(mm(h, w_out), 0.0)


if __name__ == "__main__":
    # Small, module-consistent shapes:
    #   G = 128 genes, K = 32 TFs (prior network is [G, K]),
    #   intermediate_sizes=(64,), decoder_sizes=(64,), output_nodes=None -> G.
    B, G, K, I, D = 16, 128, 32, 64, 64

    key = jax.random.PRNGKey(0)
    k_x, k_prior, k_enc, k_int, k_dec, k_out = jax.random.split(key, 6)

    x = jax.random.normal(k_x, (B, G), dtype=jnp.float32)

    # Prior-network connectivity mask [G, K], applied to the encoder weight.
    prior_mask = jax.random.bernoulli(k_prior, p=0.3, shape=(G, K)).astype(jnp.float32)

    # Weights in PyTorch Linear layout [out_features, in_features], bias=False.
    w_enc = 0.1 * jax.random.normal(k_enc, (K, G), dtype=jnp.float32)   # encoder Linear(g, k)
    w_enc = w_enc * prior_mask.T                                        # mask by prior network
    w_int = 0.1 * jax.random.normal(k_int, (I, K), dtype=jnp.float32)   # _intermediate Linear(k, 64)
    w_dec = 0.1 * jax.random.normal(k_dec, (D, I), dtype=jnp.float32)   # _decoder Linear(64, 64)
    w_out = 0.1 * jax.random.normal(k_out, (G, D), dtype=jnp.float32)   # _decoder[-2] Linear(64, g)

    # One-time weight prep (cast + transpose + pad), hoisted out of the hot path.
    params = prepare_tf_autoencoder_params(w_enc, w_int, w_dec, w_out)

    out = tf_multilayer_autoencoder_forward(x, params)
    out = jax.block_until_ready(out)

    ref = reference_forward(x, w_enc, w_int, w_dec, w_out)

    assert out.shape == (B, G), out.shape
    out_f32 = out.astype(jnp.float32)
    assert jnp.allclose(out_f32, ref, atol=3e-2, rtol=3e-2), float(
        jnp.max(jnp.abs(out_f32 - ref)))

    print("KERNEL_OK")
</pallas_src>

<mosaic_0001>
module attributes {stable_mosaic.version = 11 : i64} {
  func.func @_ae_kernel(%arg0: i32, %arg1: i32, %arg2: memref<16x128xf32, #tpu.memory_space<vmem>>, %arg3: memref<128x128xbf16, #tpu.memory_space<vmem>>, %arg4: memref<128x128xbf16, #tpu.memory_space<vmem>>, %arg5: memref<128x128xbf16, #tpu.memory_space<vmem>>, %arg6: memref<128x128xbf16, #tpu.memory_space<vmem>>, %arg7: memref<16x128xbf16, #tpu.memory_space<vmem>>, %arg8: memref<16x128xbf16, #tpu.memory_space<vmem>>) attributes {dimension_semantics = [#tpu.dimension_semantics<parallel>, #tpu.dimension_semantics<arbitrary>], iteration_bounds = array<i64: 1, 1>, scalar_prefetch = 0 : i64, scratch_operands = 1 : i64, tpu.core_type = #tpu.core_type<tc>, window_params = [{transform_indices = @transform_0, window_bounds = array<i64: 16, 128>}, {pipeline_mode = #tpu.pipeline_mode<synchronous>, transform_indices = @transform_1, window_bounds = array<i64: 128, 128>}, {pipeline_mode = #tpu.pipeline_mode<synchronous>, transform_indices = @transform_2, window_bounds = array<i64: 128, 128>}, {pipeline_mode = #tpu.pipeline_mode<synchronous>, transform_indices = @transform_3, window_bounds = array<i64: 128, 128>}, {pipeline_mode = #tpu.pipeline_mode<synchronous>, transform_indices = @transform_4, window_bounds = array<i64: 128, 128>}, {transform_indices = @transform_5, window_bounds = array<i64: 16, 128>}]} {
    %c0_i32 = arith.constant 0 : i32
    %0 = arith.cmpi eq, %arg1, %c0_i32 : i32
    %1 = arith.extui %0 : i1 to i32
    %c0_i32_0 = arith.constant 0 : i32
    %2 = arith.cmpi ne, %1, %c0_i32_0 : i32
    scf.if %2 {
      %c0_7 = arith.constant 0 : index
      %c0_8 = arith.constant 0 : index
      %10 = vector.load %arg2[%c0_7, %c0_8] : memref<16x128xf32, #tpu.memory_space<vmem>>, vector<16x128xf32>
      %11 = arith.truncf %10 : vector<16x128xf32> to vector<16x128xbf16>
      %c0_9 = arith.constant 0 : index
      %c0_10 = arith.constant 0 : index
      %12 = vector.load %arg3[%c0_9, %c0_10] : memref<128x128xbf16, #tpu.memory_space<vmem>>, vector<128x128xbf16>
      %cst_11 = arith.constant dense<0.000000e+00> : vector<16x128xf32>
      %13 = tpu.matmul %11, %12, %cst_11 {dimension_numbers = #tpu.dot_dimension_numbers<[1], [0], [0], [1], [0, 0, 1, 1], [], []>} : vector<16x128xbf16>, vector<128x128xbf16>, vector<16x128xf32> -> vector<16x128xf32>
      %cst_12 = arith.constant 0.000000e+00 : f32
      %14 = vector.broadcast %cst_12 : f32 to vector<16x128xf32>
      %15 = arith.maximumf %13, %14 : vector<16x128xf32>
      %16 = arith.truncf %15 : vector<16x128xf32> to vector<16x128xbf16>
      %c0_13 = arith.constant 0 : index
      %c0_14 = arith.constant 0 : index
      %17 = vector.load %arg4[%c0_13, %c0_14] : memref<128x128xbf16, #tpu.memory_space<vmem>>, vector<128x128xbf16>
      %cst_15 = arith.constant dense<0.000000e+00> : vector<16x128xf32>
      %18 = tpu.matmul %16, %17, %cst_15 {dimension_numbers = #tpu.dot_dimension_numbers<[1], [0], [0], [1], [0, 0, 1, 1], [], []>} : vector<16x128xbf16>, vector<128x128xbf16>, vector<16x128xf32> -> vector<16x128xf32>
      %cst_16 = arith.constant 0.000000e+00 : f32
      %19 = vector.broadcast %cst_16 : f32 to vector<16x128xf32>
      %20 = arith.maximumf %18, %19 : vector<16x128xf32>
      %21 = arith.truncf %20 : vector<16x128xf32> to vector<16x128xbf16>
      %c0_17 = arith.constant 0 : index
      %c0_18 = arith.constant 0 : index
      %22 = vector.load %arg5[%c0_17, %c0_18] : memref<128x128xbf16, #tpu.memory_space<vmem>>, vector<128x128xbf16>
      %cst_19 = arith.constant dense<0.000000e+00> : vector<16x128xf32>
      %23 = tpu.matmul %21, %22, %cst_19 {dimension_numbers = #tpu.dot_dimension_numbers<[1], [0], [0], [1], [0, 0, 1, 1], [], []>} : vector<16x128xbf16>, vector<128x128xbf16>, vector<16x128xf32> -> vector<16x128xf32>
      %cst_20 = arith.constant 0.000000e+00 : f32
      %24 = vector.broadcast %cst_20 : f32 to vector<16x128xf32>
      %25 = arith.maximumf %23, %24 : vector<16x128xf32>
      %26 = arith.truncf %25 : vector<16x128xf32> to vector<16x128xbf16>
      %c0_21 = arith.constant 0 : index
      %c0_22 = arith.constant 0 : index
      %27 = vector.load %arg8[%c0_21, %c0_22] : memref<16x128xbf16, #tpu.memory_space<vmem>>, vector<16x128xbf16>
      tpu.vector_store %arg8[%c0_21, %c0_22], %26 {strides = array<i32>} : memref<16x128xbf16, #tpu.memory_space<vmem>>, vector<16x128xbf16>,
    } else {
    }
    %c0 = arith.constant 0 : index
    %c0_1 = arith.constant 0 : index
    %3 = vector.load %arg8[%c0, %c0_1] : memref<16x128xbf16, #tpu.memory_space<vmem>>, vector<16x128xbf16>
    %c0_2 = arith.constant 0 : index
    %c0_3 = arith.constant 0 : index
    %4 = vector.load %arg6[%c0_2, %c0_3] : memref<128x128xbf16, #tpu.memory_space<vmem>>, vector<128x128xbf16>
    %cst = arith.constant dense<0.000000e+00> : vector<16x128xf32>
    %5 = tpu.matmul %3, %4, %cst {dimension_numbers = #tpu.dot_dimension_numbers<[1], [0], [0], [1], [0, 0, 1, 1], [], []>} : vector<16x128xbf16>, vector<128x128xbf16>, vector<16x128xf32> -> vector<16x128xf32>
    %cst_4 = arith.constant 0.000000e+00 : f32
    %6 = vector.broadcast %cst_4 : f32 to vector<16x128xf32>
    %7 = arith.maximumf %5, %6 : vector<16x128xf32>
    %8 = arith.truncf %7 : vector<16x128xf32> to vector<16x128xbf16>
    %c0_5 = arith.constant 0 : index
    %c0_6 = arith.constant 0 : index
    %9 = vector.load %arg7[%c0_5, %c0_6] : memref<16x128xbf16, #tpu.memory_space<vmem>>, vector<16x128xbf16>
    tpu.vector_store %arg7[%c0_5, %c0_6], %8 {strides = array<i32>} : memref<16x128xbf16, #tpu.memory_space<vmem>>, vector<16x128xbf16>,
    return
  }
  func.func @transform_0(%arg0: i32, %arg1: i32) -> (i32, i32) {
    %c0_i32 = arith.constant 0 : i32
    %c0_i32_0 = arith.constant 0 : i32
    return %arg0, %c0_i32 : i32, i32
  }
  func.func @transform_1(%arg0: i32, %arg1: i32) -> (i32, i32) {
    %c0_i32 = arith.constant 0 : i32
    %c0_i32_0 = arith.constant 0 : i32
    %c0_i32_1 = arith.constant 0 : i32
    return %c0_i32, %c0_i32_0 : i32, i32
  }
  func.func @transform_2(%arg0: i32, %arg1: i32) -> (i32, i32) {
    %c0_i32 = arith.constant 0 : i32
    %c0_i32_0 = arith.constant 0 : i32
    %c0_i32_1 = arith.constant 0 : i32
    return %c0_i32, %c0_i32_0 : i32, i32
  }
  func.func @transform_3(%arg0: i32, %arg1: i32) -> (i32, i32) {
    %c0_i32 = arith.constant 0 : i32
    %c0_i32_0 = arith.constant 0 : i32
    %c0_i32_1 = arith.constant 0 : i32
    return %c0_i32, %c0_i32_0 : i32, i32
  }
  func.func @transform_4(%arg0: i32, %arg1: i32) -> (i32, i32) {
    %c0_i32 = arith.constant 0 : i32
    %c0_i32_0 = arith.constant 0 : i32
    return %c0_i32, %arg1 : i32, i32
  }
  func.func @transform_5(%arg0: i32, %arg1: i32) -> (i32, i32) {
    %c0_i32 = arith.constant 0 : i32
    return %arg0, %arg1 : i32, i32
  }
}

</mosaic_0001>

<llo_original>
// kernel: tpu_custom_call.1
$region0: #{tpu_custom_call.1}
  #allocation0 [shape = 'u32[]', space=smem, size = 0x4, offset = 0x4, fixed_abs, tag = 'smem constant byte address 0x4 - core index']
  #allocation1 [shape = 'u32[72,128]{1,0:T(1,128)}', space=vmem, size = 0x9000, scoped, tag = 'internal scratch']
  #allocation2 [shape = 'bf16[16,128]{1,0:T(8,128)(2,1)}', space=vmem, size = 0x1000, scoped, tag = 'scratch operand']
  %s0 = inlined_call_operand.hbm [shape: f32[16,128], index: 0, kind: input, shape index: {}]
  %s1 = inlined_call_operand.hbm [shape: bf16[128,128], index: 1, kind: input, shape index: {}]
  %s2 = inlined_call_operand.hbm [shape: bf16[128,128], index: 2, kind: input, shape index: {}]
  %s3 = inlined_call_operand.hbm [shape: bf16[128,128], index: 3, kind: input, shape index: {}]
  %s4 = inlined_call_operand.hbm [shape: bf16[128,128], index: 4, kind: input, shape index: {}]
  %s5 = inlined_call_operand.hbm [shape: bf16[16,128], index: 5, kind: output, shape index: {}]
  %s6 = sld [smem:[#allocation0]]
  $region54: #{tpu_custom_call.1} parent=0
    _
  %s8 = ssub.s32 1, %s6
  %s9 = scalar_select 0, %s8, %s6
  $region1: #{tpu_custom_call.1} parent=0
    #allocation3 [shape = 'u8[8192]{0}', space=vmem, size = 0x2000, scoped, tag = 'input window, operand 0, single buffered']
    #allocation4 [shape = 's32[1]{0}', space=sflag, size = 0x4, scoped, tag = 'scoped memory for tpu_custom_call.1']
    #allocation5 [shape = 's32[1]{0}', space=sflag, size = 0x4, scoped, tag = 'scoped memory for tpu_custom_call.1']
    #allocation6 [shape = 'u8[32768]{0}', space=vmem, size = 0x8000, scoped, tag = 'input window, operand 1, single buffered']
    #allocation7 [shape = 's32[1]{0}', space=sflag, size = 0x4, scoped, tag = 'scoped memory for tpu_custom_call.1']
    #allocation8 [shape = 'u8[32768]{0}', space=vmem, size = 0x8000, scoped, tag = 'input window, operand 2, single buffered']
    #allocation9 [shape = 'u8[32768]{0}', space=vmem, size = 0x8000, scoped, tag = 'input window, operand 3, single buffered']
    #allocation10 [shape = 's32[1]{0}', space=sflag, size = 0x4, scoped, tag = 'scoped memory for tpu_custom_call.1']
    #allocation11 [shape = 'u8[32768]{0}', space=vmem, size = 0x8000, scoped, tag = 'input window, operand 4, single buffered']
    #allocation12 [shape = 'u8[4096]{0}', space=vmem, size = 0x1000, scoped, tag = 'output window, operand 0, single buffered']
    %10 = vsyncpa [#allocation4], 0
    %11 = vsyncpa [#allocation7], 0
    %12 = vsyncpa [#allocation10], 0
    %13 = vsyncpa [#allocation5], 0
    // Predicated region
    $region2: #{tpu_custom_call.1} parent=1 // pred_check
      _
    $region3: #{tpu_custom_call.1} parent=1 // pred_check_branch
      %15 = sbr.rel (0) target = $region5
    $region4: #{tpu_custom_call.1} parent=1 // pred_region
      %17 = vsyncadd [#allocation4], 0
      %s18 = sshll.u32 %s0, 4
      %s19 = int_to_ptr.hbm [resolvable:$true] %s18
      %s20 = sshll.u32 [#allocation3], 4
      %s21 = int_to_ptr.vmem [resolvable:$true] %s20
      %26 = dma.hbm_to_vmem [thread:$0]  %s19, 256, %s21, [#allocation4], 128, 128, 8
    $region5: #{tpu_custom_call.1} parent=1 // pred_fallthru
      _
    // Predicated region
    $region6: #{tpu_custom_call.1} parent=1 // pred_check
      _
    $region7: #{tpu_custom_call.1} parent=1 // pred_check_branch
      %28 = sbr.rel (0) target = $region9
    $region8: #{tpu_custom_call.1} parent=1 // pred_region
      %30 = vsyncadd [#allocation7], 0
      %s31 = sshll.u32 %s1, 4
      %s32 = int_to_ptr.hbm [resolvable:$true] %s31
      %s33 = sshll.u32 [#allocation6], 4
      %s34 = int_to_ptr.vmem [resolvable:$true] %s33
      %39 = dma.hbm_to_vmem [thread:$0]  %s32, 1024, %s34, [#allocation7], 64, 64, 4
    $region9: #{tpu_custom_call.1} parent=1 // pred_fallthru
      _
    // Predicated region
    $region10: #{tpu_custom_call.1} parent=1 // pred_check
      _
    $region11: #{tpu_custom_call.1} parent=1 // pred_check_branch
      %41 = sbr.rel (0) target = $region13
    $region12: #{tpu_custom_call.1} parent=1 // pred_region
      %43 = vsyncadd [#allocation7], 0
      %s44 = sshll.u32 %s2, 4
      %s45 = int_to_ptr.hbm [resolvable:$true] %s44
      %s46 = sshll.u32 [#allocation8], 4
      %s47 = int_to_ptr.vmem [resolvable:$true] %s46
      %52 = dma.hbm_to_vmem [thread:$0]  %s45, 1024, %s47, [#allocation7], 64, 64, 4
    $region13: #{tpu_custom_call.1} parent=1 // pred_fallthru
      _
    // Predicated region
    $region14: #{tpu_custom_call.1} parent=1 // pred_check
      _
    $region15: #{tpu_custom_call.1} parent=1 // pred_check_branch
      %54 = sbr.rel (0) target = $region17
    $region16: #{tpu_custom_call.1} parent=1 // pred_region
      %56 = vsyncadd [#allocation10], 0
      %s57 = sshll.u32 %s3, 4
      %s58 = int_to_ptr.hbm [resolvable:$true] %s57
      %s59 = sshll.u32 [#allocation9], 4
      %s60 = int_to_ptr.vmem [resolvable:$true] %s59
      %65 = dma.hbm_to_vmem [thread:$0]  %s58, 1024, %s60, [#allocation10], 64, 64, 4
    $region17: #{tpu_custom_call.1} parent=1 // pred_fallthru
      _
    // Predicated region
    $region18: #{tpu_custom_call.1} parent=1 // pred_check
      _
    $region19: #{tpu_custom_call.1} parent=1 // pred_check_branch
      %67 = sbr.rel (0) target = $region21
    $region20: #{tpu_custom_call.1} parent=1 // pred_region
      %69 = vsyncadd [#allocation10], 0
      %s70 = sshll.u32 %s4, 4
      %s71 = int_to_ptr.hbm [resolvable:$true] %s70
      %s72 = sshll.u32 [#allocation11], 4
      %s73 = int_to_ptr.vmem [resolvable:$true] %s72
      %78 = dma.hbm_to_vmem [thread:$0]  %s71, 1024, %s73, [#allocation10], 64, 64, 4
    $region21: #{tpu_custom_call.1} parent=1 // pred_fallthru
      _
    // Predicated region
    $region22: #{tpu_custom_call.1} parent=1 // pred_check
      _
    $region23: #{tpu_custom_call.1} parent=1 // pred_check_branch
      %80 = sbr.rel (0) target = $region25
    $region24: #{tpu_custom_call.1} parent=1 // pred_region
      %82 = dma.done [#allocation4], 256
    $region25: #{tpu_custom_call.1} parent=1 // pred_fallthru
      _
    // Predicated region
    $region26: #{tpu_custom_call.1} parent=1 // pred_check
      _
    $region27: #{tpu_custom_call.1} parent=1 // pred_check_branch
      %84 = sbr.rel (0) target = $region29
    $region28: #{tpu_custom_call.1} parent=1 // pred_region
      %86 = dma.done [#allocation7], 1024
    $region29: #{tpu_custom_call.1} parent=1 // pred_fallthru
      _
    // Predicated region
    $region30: #{tpu_custom_call.1} parent=1 // pred_check
      _
    $region31: #{tpu_custom_call.1} parent=1 // pred_check_branch
      %88 = sbr.rel (0) target = $region33
    $region32: #{tpu_custom_call.1} parent=1 // pred_region
      %90 = dma.done [#allocation7], 1024
    $region33: #{tpu_custom_call.1} parent=1 // pred_fallthru
      _
    // Predicated region
    $region34: #{tpu_custom_call.1} parent=1 // pred_check
      _
    $region35: #{tpu_custom_call.1} parent=1 // pred_check_branch
      %92 = sbr.rel (0) target = $region37
    $region36: #{tpu_custom_call.1} parent=1 // pred_region
      %94 = dma.done [#allocation10], 1024
    $region37: #{tpu_custom_call.1} parent=1 // pred_fallthru
      _
    // Predicated region
    $region38: #{tpu_custom_call.1} parent=1 // pred_check
      _
    $region39: #{tpu_custom_call.1} parent=1 // pred_check_branch
      %96 = sbr.rel (0) target = $region41
    $region40: #{tpu_custom_call.1} parent=1 // pred_region
      %98 = dma.done [#allocation10], 1024
    $region41: #{tpu_custom_call.1} parent=1 // pred_fallthru
      _
    %p99 = scmp.eq.s32.totalorder 0, 0
    // Predicated region
    $region42: #{tpu_custom_call.1} parent=1 // pred_check
      %p100 = pneg %p99
    $region43: #{tpu_custom_call.1} parent=1 // pred_check_branch
      %102 = sbr.rel (%p100) target = $region45
    $region44: #{tpu_custom_call.1} parent=1 // pred_region
      %v103 = vld [vmem:[#allocation3] sm:$0xff]
      %v104 = vld [vmem:[#allocation3 + $0x8] sm:$0xff]
      %v105 = vpack.c.bf16 %v104, %v103
      %v106 = vld [vmem:[#allocation6] sm:$0xf]
      %v107 = vld [vmem:[#allocation6 + $0x4] sm:$0xf]
      %v108 = vld [vmem:[#allocation6 + $0x8] sm:$0xf]
      %v109 = vld [vmem:[#allocation6 + $0xc] sm:$0xf]
      %v110 = vld [vmem:[#allocation6 + $0x10] sm:$0xf]
      %v111 = vld [vmem:[#allocation6 + $0x14] sm:$0xf]
      %v112 = vld [vmem:[#allocation6 + $0x18] sm:$0xf]
      %v113 = vld [vmem:[#allocation6 + $0x1c] sm:$0xf]
      %v114 = vld [vmem:[#allocation6 + $0x20] sm:$0xf]
      %v115 = vld [vmem:[#allocation6 + $0x24] sm:$0xf]
      %v116 = vld [vmem:[#allocation6 + $0x28] sm:$0xf]
      %v117 = vld [vmem:[#allocation6 + $0x2c] sm:$0xf]
      %v118 = vld [vmem:[#allocation6 + $0x30] sm:$0xf]
      %v119 = vld [vmem:[#allocation6 + $0x34] sm:$0xf]
      %v120 = vld [vmem:[#allocation6 + $0x38] sm:$0xf]
      %v121 = vld [vmem:[#allocation6 + $0x3c] sm:$0xf]
      %v138 = vunpack.c.l.b16 %v106
      %v139 = vunpack.c.l.b16 %v107
      %v140 = vunpack.c.l.b16 %v108
      %v141 = vunpack.c.l.b16 %v109
      %v142 = vunpack.c.l.b16 %v110
      %v143 = vunpack.c.l.b16 %v111
      %v144 = vunpack.c.l.b16 %v112
      %v145 = vunpack.c.l.b16 %v113
      %v146 = vunpack.c.l.b16 %v114
      %v147 = vunpack.c.l.b16 %v115
      %v148 = vunpack.c.l.b16 %v116
      %v149 = vunpack.c.l.b16 %v117
      %v150 = vunpack.c.l.b16 %v118
      %v151 = vunpack.c.l.b16 %v119
      %v152 = vunpack.c.l.b16 %v120
      %v153 = vunpack.c.l.b16 %v121
      %v154 = vpack.c.b16 %v139, %v138
      %v155 = vpack.c.b16 %v141, %v140
      %v156 = vpack.c.b16 %v143, %v142
      %v157 = vpack.c.b16 %v145, %v144
      %v158 = vpack.c.b16 %v147, %v146
      %v159 = vpack.c.b16 %v149, %v148
      %v160 = vpack.c.b16 %v151, %v150
      %v161 = vpack.c.b16 %v153, %v152
      %170 = vmatpush.bf16.msra.mxu0 %v161
      %171 = vmatpush.bf16.msra.mxu0 %v160
      %172 = vmatpush.bf16.msra.mxu0 %v159
      %173 = vmatpush.bf16.msra.mxu0 %v158
      %174 = vmatpush.bf16.msra.mxu0 %v157
      %175 = vmatpush.bf16.msra.mxu0 %v156
      %176 = vmatpush.bf16.msra.mxu0 %v155
      %177 = vmatpush.bf16.msra.mxu0 %v154
      %178 = vmatmul.bf16.gmra.mxu0 %v105
      %v179 = vpop.f32.mrf.mxu0
      %v180 = vadd.f32 0.0, %v179
      %v181 = vpop.f32.mrf.mxu0
      %v182 = vadd.f32 0.0, %v181
      %183 = vdwg.mxu0
      %v184 = vmax.f32 %v180, 0.0
      %v185 = vmax.f32 %v182, 0.0
      %v186 = vpack.c.bf16 %v185, %v184
      %v187 = vld [vmem:[#allocation8] sm:$0xf]
      %v188 = vld [vmem:[#allocation8 + $0x4] sm:$0xf]
      %v189 = vld [vmem:[#allocation8 + $0x8] sm:$0xf]
      %v190 = vld [vmem:[#allocation8 + $0xc] sm:$0xf]
      %v191 = vld [vmem:[#allocation8 + $0x10] sm:$0xf]
      %v192 = vld [vmem:[#allocation8 + $0x14] sm:$0xf]
      %v193 = vld [vmem:[#allocation8 + $0x18] sm:$0xf]
      %v194 = vld [vmem:[#allocation8 + $0x1c] sm:$0xf]
      %v195 = vld [vmem:[#allocation8 + $0x20] sm:$0xf]
      %v196 = vld [vmem:[#allocation8 + $0x24] sm:$0xf]
      %v197 = vld [vmem:[#allocation8 + $0x28] sm:$0xf]
      %v198 = vld [vmem:[#allocation8 + $0x2c] sm:$0xf]
      %v199 = vld [vmem:[#allocation8 + $0x30] sm:$0xf]
      %v200 = vld [vmem:[#allocation8 + $0x34] sm:$0xf]
      %v201 = vld [vmem:[#allocation8 + $0x38] sm:$0xf]
      %v202 = vld [vmem:[#allocation8 + $0x3c] sm:$0xf]
      %v219 = vunpack.c.l.b16 %v187
      %v220 = vunpack.c.l.b16 %v188
      %v221 = vunpack.c.l.b16 %v189
      %v222 = vunpack.c.l.b16 %v190
      %v223 = vunpack.c.l.b16 %v191
      %v224 = vunpack.c.l.b16 %v192
      %v225 = vunpack.c.l.b16 %v193
      %v226 = vunpack.c.l.b16 %v194
      %v227 = vunpack.c.l.b16 %v195
      %v228 = vunpack.c.l.b16 %v196
      %v229 = vunpack.c.l.b16 %v197
      %v230 = vunpack.c.l.b16 %v198
      %v231 = vunpack.c.l.b16 %v199
      %v232 = vunpack.c.l.b16 %v200
      %v233 = vunpack.c.l.b16 %v201
      %v234 = vunpack.c.l.b16 %v202
      %v235 = vpack.c.b16 %v220, %v219
      %v236 = vpack.c.b16 %v222, %v221
      %v237 = vpack.c.b16 %v224, %v223
      %v238 = vpack.c.b16 %v226, %v225
      %v239 = vpack.c.b16 %v228, %v227
      %v240 = vpack.c.b16 %v230, %v229
      %v241 = vpack.c.b16 %v232, %v231
      %v242 = vpack.c.b16 %v234, %v233
      %251 = vmatpush.bf16.msra.mxu0 %v242
      %252 = vmatpush.bf16.msra.mxu0 %v241
      %253 = vmatpush.bf16.msra.mxu0 %v240
      %254 = vmatpush.bf16.msra.mxu0 %v239
      %255 = vmatpush.bf16.msra.mxu0 %v238
      %256 = vmatpush.bf16.msra.mxu0 %v237
      %257 = vmatpush.bf16.msra.mxu0 %v236
      %258 = vmatpush.bf16.msra.mxu0 %v235
      %259 = vmatmul.bf16.gmra.mxu0 %v186
      %v260 = vpop.f32.mrf.mxu0
      %v261 = vadd.f32 0.0, %v260
      %v262 = vpop.f32.mrf.mxu0
      %v263 = vadd.f32 0.0, %v262
      %264 = vdwg.mxu0
      %v265 = vmax.f32 %v261, 0.0
      %v266 = vmax.f32 %v263, 0.0
      %v267 = vpack.c.bf16 %v266, %v265
      %v268 = vld [vmem:[#allocation9] sm:$0xf]
      %v269 = vld [vmem:[#allocation9 + $0x4] sm:$0xf]
      %v270 = vld [vmem:[#allocation9 + $0x8] sm:$0xf]
      %v271 = vld [vmem:[#allocation9 + $0xc] sm:$0xf]
      %v272 = vld [vmem:[#allocation9 + $0x10] sm:$0xf]
      %v273 = vld [vmem:[#allocation9 + $0x14] sm:$0xf]
      %v274 = vld [vmem:[#allocation9 + $0x18] sm:$0xf]
      %v275 = vld [vmem:[#allocation9 + $0x1c] sm:$0xf]
      %v276 = vld [vmem:[#allocation9 + $0x20] sm:$0xf]
      %v277 = vld [vmem:[#allocation9 + $0x24] sm:$0xf]
      %v278 = vld [vmem:[#allocation9 + $0x28] sm:$0xf]
      %v279 = vld [vmem:[#allocation9 + $0x2c] sm:$0xf]
      %v280 = vld [vmem:[#allocation9 + $0x30] sm:$0xf]
      %v281 = vld [vmem:[#allocation9 + $0x34] sm:$0xf]
      %v282 = vld [vmem:[#allocation9 + $0x38] sm:$0xf]
      %v283 = vld [vmem:[#allocation9 + $0x3c] sm:$0xf]
      %v300 = vunpack.c.l.b16 %v268
      %v301 = vunpack.c.l.b16 %v269
      %v302 = vunpack.c.l.b16 %v270
      %v303 = vunpack.c.l.b16 %v271
      %v304 = vunpack.c.l.b16 %v272
      %v305 = vunpack.c.l.b16 %v273
      %v306 = vunpack.c.l.b16 %v274
      %v307 = vunpack.c.l.b16 %v275
      %v308 = vunpack.c.l.b16 %v276
      %v309 = vunpack.c.l.b16 %v277
      %v310 = vunpack.c.l.b16 %v278
      %v311 = vunpack.c.l.b16 %v279
      %v312 = vunpack.c.l.b16 %v280
      %v313 = vunpack.c.l.b16 %v281
      %v314 = vunpack.c.l.b16 %v282
      %v315 = vunpack.c.l.b16 %v283
      %v316 = vpack.c.b16 %v301, %v300
      %v317 = vpack.c.b16 %v303, %v302
      %v318 = vpack.c.b16 %v305, %v304
      %v319 = vpack.c.b16 %v307, %v306
      %v320 = vpack.c.b16 %v309, %v308
      %v321 = vpack.c.b16 %v311, %v310
      %v322 = vpack.c.b16 %v313, %v312
      %v323 = vpack.c.b16 %v315, %v314
      %332 = vmatpush.bf16.msra.mxu0 %v323
      %333 = vmatpush.bf16.msra.mxu0 %v322
      %334 = vmatpush.bf16.msra.mxu0 %v321
      %335 = vmatpush.bf16.msra.mxu0 %v320
      %336 = vmatpush.bf16.msra.mxu0 %v319
      %337 = vmatpush.bf16.msra.mxu0 %v318
      %338 = vmatpush.bf16.msra.mxu0 %v317
      %339 = vmatpush.bf16.msra.mxu0 %v316
      %340 = vmatmul.bf16.gmra.mxu0 %v267
      %v341 = vpop.f32.mrf.mxu0
      %v342 = vadd.f32 0.0, %v341
      %v343 = vpop.f32.mrf.mxu0
      %v344 = vadd.f32 0.0, %v343
      %345 = vdwg.mxu0
      %v346 = vmax.f32 %v342, 0.0
      %v347 = vmax.f32 %v344, 0.0
      %v348 = vpack.c.bf16 %v346, %v346
      %v349 = vpack.c.bf16 %v347, %v347
      %350 = vst [vmem:[#allocation2] sm:$0xf] %v348
      %351 = vst [vmem:[#allocation2 + $0x4] sm:$0xf] %v349
    $region45: #{tpu_custom_call.1} parent=1 // pred_fallthru
      _
    %v352 = vld [vmem:[#allocation2] sm:$0xf]
    %v353 = vld [vmem:[#allocation2 + $0x4] sm:$0xf]
    %v354 = vld [vmem:[#allocation11] sm:$0xf]
    %v355 = vld [vmem:[#allocation11 + $0x4] sm:$0xf]
    %v356 = vld [vmem:[#allocation11 + $0x8] sm:$0xf]
    %v357 = vld [vmem:[#allocation11 + $0xc] sm:$0xf]
    %v358 = vld [vmem:[#allocation11 + $0x10] sm:$0xf]
    %v359 = vld [vmem:[#allocation11 + $0x14] sm:$0xf]
    %v360 = vld [vmem:[#allocation11 + $0x18] sm:$0xf]
    %v361 = vld [vmem:[#allocation11 + $0x1c] sm:$0xf]
    %v362 = vld [vmem:[#allocation11 + $0x20] sm:$0xf]
    %v363 = vld [vmem:[#allocation11 + $0x24] sm:$0xf]
    %v364 = vld [vmem:[#allocation11 + $0x28] sm:$0xf]
    %v365 = vld [vmem:[#allocation11 + $0x2c] sm:$0xf]
    %v366 = vld [vmem:[#allocation11 + $0x30] sm:$0xf]
    %v367 = vld [vmem:[#allocation11 + $0x34] sm:$0xf]
    %v368 = vld [vmem:[#allocation11 + $0x38] sm:$0xf]
    %v369 = vld [vmem:[#allocation11 + $0x3c] sm:$0xf]
    %v372 = vunpack.c.l.b16 %v352
    %v373 = vunpack.c.l.b16 %v353
    %v374 = vpack.c.b16 %v373, %v372
    %v392 = vunpack.c.l.b16 %v354
    %v393 = vunpack.c.l.b16 %v355
    %v394 = vunpack.c.l.b16 %v356
    %v395 = vunpack.c.l.b16 %v357
    %v396 = vunpack.c.l.b16 %v358
    %v397 = vunpack.c.l.b16 %v359
    %v398 = vunpack.c.l.b16 %v360
    %v399 = vunpack.c.l.b16 %v361
    %v400 = vunpack.c.l.b16 %v362
    %v401 = vunpack.c.l.b16 %v363
    %v402 = vunpack.c.l.b16 %v364
    %v403 = vunpack.c.l.b16 %v365
    %v404 = vunpack.c.l.b16 %v366
    %v405 = vunpack.c.l.b16 %v367
    %v406 = vunpack.c.l.b16 %v368
    %v407 = vunpack.c.l.b16 %v369
    %v408 = vpack.c.b16 %v393, %v392
    %v409 = vpack.c.b16 %v395, %v394
    %v410 = vpack.c.b16 %v397, %v396
    %v411 = vpack.c.b16 %v399, %v398
    %v412 = vpack.c.b16 %v401, %v400
    %v413 = vpack.c.b16 %v403, %v402
    %v414 = vpack.c.b16 %v405, %v404
    %v415 = vpack.c.b16 %v407, %v406
    %424 = vmatpush.bf16.msra.mxu0 %v415
    %425 = vmatpush.bf16.msra.mxu0 %v414
    %426 = vmatpush.bf16.msra.mxu0 %v413
    %427 = vmatpush.bf16.msra.mxu0 %v412
    %428 = vmatpush.bf16.msra.mxu0 %v411
    %429 = vmatpush.bf16.msra.mxu0 %v410
    %430 = vmatpush.bf16.msra.mxu0 %v409
    %431 = vmatpush.bf16.msra.mxu0 %v408
    %432 = vmatmul.bf16.gmra.mxu0 %v374
    %v433 = vpop.f32.mrf.mxu0
    %v434 = vadd.f32 0.0, %v433
    %v435 = vpop.f32.mrf.mxu0
    %v436 = vadd.f32 0.0, %v435
    %437 = vdwg.mxu0
    %v438 = vmax.f32 %v434, 0.0
    %v439 = vmax.f32 %v436, 0.0
    %v440 = vpack.c.bf16 %v438, %v438
    %v441 = vpack.c.bf16 %v439, %v439
    %442 = vst [vmem:[#allocation12] sm:$0xf] %v440
    %443 = vst [vmem:[#allocation12 + $0x4] sm:$0xf] %v441
    // Predicated region
    $region46: #{tpu_custom_call.1} parent=1 // pred_check
      _
    $region47: #{tpu_custom_call.1} parent=1 // pred_check_branch
      %445 = sbr.rel (0) target = $region49
    $region48: #{tpu_custom_call.1} parent=1 // pred_region
      %447 = vsyncadd [#allocation5], 0
      %s448 = sshll.u32 [#allocation12], 4
      %s449 = int_to_ptr.vmem [resolvable:$true] %s448
      %s450 = sshll.u32 %s5, 4
      %s451 = int_to_ptr.hbm [resolvable:$true] %s450
      %456 = dma.vmem_to_hbm [thread:$0]  %s449, 128, %s451, [#allocation5], 64, 64, 4
    $region49: #{tpu_custom_call.1} parent=1 // pred_fallthru
      _
    // Predicated region
    $region50: #{tpu_custom_call.1} parent=1 // pred_check
      _
    $region51: #{tpu_custom_call.1} parent=1 // pred_check_branch
      %458 = sbr.rel (0) target = $region53
    $region52: #{tpu_custom_call.1} parent=1 // pred_region
      %460 = dma.done [#allocation5], 128
    $region53: #{tpu_custom_call.1} parent=1 // pred_fallthru
      _
    %461 = vsyncpa [#allocation4], 1
    %462 = vsyncpa [#allocation7], 1
    %463 = vsyncpa [#allocation10], 1
    %464 = vsyncpa [#allocation5], 1

</llo_original>
